<compile_context>
chip_gen: v7x
topology: tpu7x:2x2x1
jax: 0.10.0
libtpu: 0.0.40
codegen_flags: <defaults>
</compile_context>

<pallas_src>
import functools

import numpy as np
import jax
import jax.numpy as jnp
from jax.experimental import pallas as pl
from jax.experimental.pallas import tpu as pltpu


# --------------------------------------------------------------------------
# Parameter init (identical math to the PyTorch __init__).
# --------------------------------------------------------------------------
def build_pe_table(d_model: int, max_len: int = 5000) -> jnp.ndarray:
    position = jnp.arange(max_len, dtype=jnp.float32)[:, None]                 # (L, 1)
    div_term = jnp.exp(
        jnp.arange(0, d_model, 2, dtype=jnp.float32) * (-np.log(10000.0) / d_model)
    )                                                                          # (D/2,)
    pe = jnp.zeros((max_len, d_model), dtype=jnp.float32)
    pe = pe.at[:, 0::2].set(jnp.sin(position * div_term))
    pe = pe.at[:, 1::2].set(jnp.cos(position * div_term))
    return pe  # (max_len, d_model); PyTorch keeps it as (max_len, 1, d_model)


# --------------------------------------------------------------------------
# Kernels.
# --------------------------------------------------------------------------
def _add_pe(x, pe, batch: int):
    """x: (TS*batch, D) tile, pe: (TS, D) tile -> x + pe broadcast over batch."""
    x = x.astype(jnp.float32)
    ts, d = pe.shape
    if batch == 1:
        return x + pe
    pe_rows = jnp.broadcast_to(pe[:, None, :], (ts, batch, d)).reshape(ts * batch, d)
    return x + pe_rows


def _pe_eval_kernel(x_ref, pe_ref, o_ref, *, batch: int):
    o_ref[...] = _add_pe(x_ref[...], pe_ref[...], batch).astype(o_ref.dtype)


def _pe_train_kernel(x_ref, pe_ref, bits_ref, o_ref, *, batch: int,
                     keep_thresh: int, inv_keep: float):
    y = _add_pe(x_ref[...], pe_ref[...], batch)
    # Integer threshold compare: bits are uniform in [0, 2^31); keep w.p. (1-p).
    keep = bits_ref[...] >= jnp.int32(keep_thresh)
    o_ref[...] = jnp.where(keep, y * jnp.float32(inv_keep),
                           jnp.zeros_like(y)).astype(o_ref.dtype)


# --------------------------------------------------------------------------
# Wrapper.
# --------------------------------------------------------------------------
def _pick_block_seq(S: int, B: int, D: int, itemsize: int,
                    target_bytes: int = 2 << 20) -> int:
    """Largest seq-tile such that one x tile is ~target_bytes and TS % 8 == 0."""
    rows = max(8, target_bytes // max(1, D * itemsize))   # rows of the flat array
    ts = rows // max(1, B)
    ts -= ts % 8
    if ts <= 0 or ts >= S:
        return S
    return ts


def positional_encoding(x, pe_table, *, dropout_p: float = 0.1, training: bool = True,
                        rng_key=None, block_seq=None):
    """x: (S, B, D).  pe_table: (max_len, D).  Returns (S, B, D) of x.dtype."""
    S, B, D = x.shape
    itemsize = jnp.dtype(x.dtype).itemsize

    pe_sd = pe_table[:S]                     # (S, D)  -- the pe[:x.size(0)] slice
    x2 = x.reshape(S * B, D)                 # free contiguous reshape (lane-dense rows)

    if block_seq is None:
        block_seq = _pick_block_seq(S, B, D, itemsize)
    ts = int(min(block_seq, S))
    if ts != S and ts % 8 != 0:
        raise ValueError(f"block_seq must be a multiple of 8 or equal S, got {ts}")
    tr = ts * B
    grid = (pl.cdiv(S, ts),)

    x_spec = pl.BlockSpec((tr, D), lambda i: (i, 0))
    pe_spec = pl.BlockSpec((ts, D), lambda i: (i, 0))
    out_spec = pl.BlockSpec((tr, D), lambda i: (i, 0))

    apply_dropout = training and dropout_p > 0.0
    flops = S * B * D                       # the broadcast add
    bytes_accessed = 2 * S * B * D * itemsize + S * D * 4   # x in, out, pe

    if apply_dropout:
        if rng_key is None:
            rng_key = jax.random.PRNGKey(0)
        # Uniform bits in [0, 2^31), stored as int32 so the in-kernel compare is signed-safe.
        bits = (jax.random.bits(rng_key, (S * B, D), dtype=jnp.uint32) >> 1).astype(jnp.int32)
        keep_thresh = int(round(dropout_p * float(2 ** 31)))
        inv_keep = 1.0 / (1.0 - dropout_p)
        kernel = functools.partial(_pe_train_kernel, batch=B,
                                   keep_thresh=keep_thresh, inv_keep=inv_keep)
        in_specs = [x_spec, pe_spec, pl.BlockSpec((tr, D), lambda i: (i, 0))]
        operands = (x2, pe_sd, bits)
        flops += 2 * S * B * D
        bytes_accessed += S * B * D * 4
    else:
        kernel = functools.partial(_pe_eval_kernel, batch=B)
        in_specs = [x_spec, pe_spec]
        operands = (x2, pe_sd)

    out2 = pl.pallas_call(
        kernel,
        out_shape=jax.ShapeDtypeStruct((S * B, D), x.dtype),
        grid_spec=pltpu.PrefetchScalarGridSpec(
            num_scalar_prefetch=0,
            grid=grid,
            in_specs=in_specs,
            out_specs=out_spec,
        ),
        compiler_params=pltpu.CompilerParams(
            dimension_semantics=("parallel",),     # shards seq tiles across TCs on v7x
        ),
        cost_estimate=pl.CostEstimate(
            flops=int(flops), transcendentals=0, bytes_accessed=int(bytes_accessed)
        ),
    )(*operands)

    return out2.reshape(S, B, D)


# --------------------------------------------------------------------------
# Demo / correctness check.
# --------------------------------------------------------------------------
if __name__ == "__main__":
    d_model = 32
    max_len = 5000
    S, B = 16, 2
    p = 0.1

    root = jax.random.PRNGKey(0)
    kx, kd = jax.random.split(root)
    x = jax.random.normal(kx, (S, B, d_model), dtype=jnp.float32)
    pe_table = build_pe_table(d_model, max_len)

    ref = np.asarray(x) + np.asarray(pe_table[:S])[:, None, :]

    # Eval mode (dropout = identity), auto blocking (single tile here).
    y_eval = jax.block_until_ready(
        positional_encoding(x, pe_table, dropout_p=p, training=False))
    np.testing.assert_allclose(np.asarray(y_eval), ref, rtol=1e-6, atol=1e-6)

    # Eval mode with an explicit seq tile of 8 -> grid=(2,), exercises the
    # pipelined multi-tile path.
    y_eval_tiled = jax.block_until_ready(
        positional_encoding(x, pe_table, dropout_p=p, training=False, block_seq=8))
    np.testing.assert_allclose(np.asarray(y_eval_tiled), ref, rtol=1e-6, atol=1e-6)

    # Training mode: inverted dropout.  Every output element must be either 0
    # (dropped) or (x + pe) / (1 - p) (kept & rescaled).
    y_train = jax.block_until_ready(
        positional_encoding(x, pe_table, dropout_p=p, training=True,
                            rng_key=kd, block_seq=8))
    y_train = np.asarray(y_train)
    assert y_train.shape == (S, B, d_model)
    scaled = ref / (1.0 - p)
    matches = (np.isclose(y_train, scaled, rtol=1e-5, atol=1e-6)
               | np.isclose(y_train, 0.0, atol=1e-7))
    assert matches.all(), "training-mode output is not {0, (x+pe)/(1-p)}"

    print("KERNEL_OK")
</pallas_src>

<mosaic_0001>
module attributes {stable_mosaic.version = 11 : i64} {
  func.func @_pe_eval_kernel(%arg0: i32, %arg1: memref<32x32xf32, #tpu.memory_space<vmem>>, %arg2: memref<16x32xf32, #tpu.memory_space<vmem>>, %arg3: memref<32x32xf32, #tpu.memory_space<vmem>>) attributes {dimension_semantics = [#tpu.dimension_semantics<parallel>], iteration_bounds = array<i64: 1>, scalar_prefetch = 0 : i64, scratch_operands = 0 : i64, tpu.core_type = #tpu.core_type<tc>, window_params = [{transform_indices = @transform_0, window_bounds = array<i64: 32, 32>}, {transform_indices = @transform_1, window_bounds = array<i64: 16, 32>}, {transform_indices = @transform_2, window_bounds = array<i64: 32, 32>}]} {
    %c0 = arith.constant 0 : index
    %c0_0 = arith.constant 0 : index
    %0 = vector.load %arg1[%c0, %c0_0] : memref<32x32xf32, #tpu.memory_space<vmem>>, vector<32x32xf32>
    %c0_1 = arith.constant 0 : index
    %c0_2 = arith.constant 0 : index
    %1 = vector.load %arg2[%c0_1, %c0_2] : memref<16x32xf32, #tpu.memory_space<vmem>>, vector<16x32xf32>
    %2 = vector.shape_cast %1 : vector<16x32xf32> to vector<16x1x32xf32>
    %3 = vector.shape_cast %2 : vector<16x1x32xf32> to vector<16x1x32xf32>
    %4 = vector.broadcast %3 : vector<16x1x32xf32> to vector<16x2x32xf32>
    %5 = vector.shape_cast %4 : vector<16x2x32xf32> to vector<32x32xf32>
    %6 = arith.addf %0, %5 : vector<32x32xf32>
    %c0_3 = arith.constant 0 : index
    %c0_4 = arith.constant 0 : index
    %7 = vector.load %arg3[%c0_3, %c0_4] : memref<32x32xf32, #tpu.memory_space<vmem>>, vector<32x32xf32>
    tpu.vector_store %arg3[%c0_3, %c0_4], %6 {strides = array<i32>} : memref<32x32xf32, #tpu.memory_space<vmem>>, vector<32x32xf32>,
    return
  }
  func.func @transform_0(%arg0: i32) -> (i32, i32) {
    %c0_i32 = arith.constant 0 : i32
    %c0_i32_0 = arith.constant 0 : i32
    return %arg0, %c0_i32 : i32, i32
  }
  func.func @transform_1(%arg0: i32) -> (i32, i32) {
    %c0_i32 = arith.constant 0 : i32
    %c0_i32_0 = arith.constant 0 : i32
    return %arg0, %c0_i32 : i32, i32
  }
  func.func @transform_2(%arg0: i32) -> (i32, i32) {
    %c0_i32 = arith.constant 0 : i32
    %c0_i32_0 = arith.constant 0 : i32
    return %arg0, %c0_i32 : i32, i32
  }
}

</mosaic_0001>

<llo_original>
// kernel: tpu_custom_call.1
$region0: #{tpu_custom_call.1}
  #allocation0 [shape = 'u32[]', space=smem, size = 0x4, offset = 0x4, fixed_abs, tag = 'smem constant byte address 0x4 - core index']
  #allocation1 [shape = 'u32[144,128]{1,0:T(1,128)}', space=vmem, size = 0x12000, scoped, tag = 'internal scratch']
  %s0 = inlined_call_operand.hbm [shape: f32[32,32], index: 0, kind: input, shape index: {}]
  %s1 = inlined_call_operand.hbm [shape: f32[16,32], index: 1, kind: input, shape index: {}]
  %s2 = inlined_call_operand.hbm [shape: f32[32,32], index: 2, kind: output, shape index: {}]
  %s3 = sld [smem:[#allocation0]]
  $region26: #{tpu_custom_call.1} parent=0
    _
  %s5 = ssub.s32 1, %s3
  %s6 = scalar_select 0, %s5, %s3
  $region1: #{tpu_custom_call.1} parent=0
    #allocation2 [shape = 'u8[16384]{0}', space=vmem, size = 0x4000, scoped, tag = 'input window, operand 0, single buffered']
    #allocation3 [shape = 's32[1]{0}', space=sflag, size = 0x4, scoped, tag = 'scoped memory for tpu_custom_call.1']
    #allocation4 [shape = 's32[1]{0}', space=sflag, size = 0x4, scoped, tag = 'scoped memory for tpu_custom_call.1']
    #allocation5 [shape = 'u8[8192]{0}', space=vmem, size = 0x2000, scoped, tag = 'input window, operand 1, single buffered']
    #allocation6 [shape = 's32[1]{0}', space=sflag, size = 0x4, scoped, tag = 'scoped memory for tpu_custom_call.1']
    #allocation7 [shape = 'u8[16384]{0}', space=vmem, size = 0x4000, scoped, tag = 'output window, operand 0, single buffered']
    %7 = vsyncpa [#allocation3], 0
    %8 = vsyncpa [#allocation6], 0
    %9 = vsyncpa [#allocation4], 0
    // Predicated region
    $region2: #{tpu_custom_call.1} parent=1 // pred_check
      _
    $region3: #{tpu_custom_call.1} parent=1 // pred_check_branch
      %11 = sbr.rel (0) target = $region5
    $region4: #{tpu_custom_call.1} parent=1 // pred_region
      %s13 = ssub.s32 512, 512
      %14 = vsyncadd [#allocation3], %s13
      %s15 = sshll.u32 [#allocation2], 4
      %s16 = int_to_ptr.vmem [resolvable:$true] %s15
      %21 = dma.hbm_to_vmem [thread:$0]  %s0, 512, %s16, [#allocation3], 128, 128, 8
    $region5: #{tpu_custom_call.1} parent=1 // pred_fallthru
      _
    // Predicated region
    $region6: #{tpu_custom_call.1} parent=1 // pred_check
      _
    $region7: #{tpu_custom_call.1} parent=1 // pred_check_branch
      %23 = sbr.rel (0) target = $region9
    $region8: #{tpu_custom_call.1} parent=1 // pred_region
      %s25 = ssub.s32 256, 256
      %26 = vsyncadd [#allocation6], %s25
      %s27 = sshll.u32 [#allocation5], 4
      %s28 = int_to_ptr.vmem [resolvable:$true] %s27
      %33 = dma.hbm_to_vmem [thread:$0]  %s1, 256, %s28, [#allocation6], 128, 128, 8
    $region9: #{tpu_custom_call.1} parent=1 // pred_fallthru
      _
    // Predicated region
    $region10: #{tpu_custom_call.1} parent=1 // pred_check
      _
    $region11: #{tpu_custom_call.1} parent=1 // pred_check_branch
      %35 = sbr.rel (0) target = $region13
    $region12: #{tpu_custom_call.1} parent=1 // pred_region
      %36 = dma.done [#allocation3], 512
    $region13: #{tpu_custom_call.1} parent=1 // pred_fallthru
      _
    // Predicated region
    $region14: #{tpu_custom_call.1} parent=1 // pred_check
      _
    $region15: #{tpu_custom_call.1} parent=1 // pred_check_branch
      %38 = sbr.rel (0) target = $region17
    $region16: #{tpu_custom_call.1} parent=1 // pred_region
      %39 = dma.done [#allocation6], 256
    $region17: #{tpu_custom_call.1} parent=1 // pred_fallthru
      _
    %v40 = vld [vmem:[#allocation2] sm:$0xff]
    %v41 = vld [vmem:[#allocation2 + $0x8] sm:$0xff]
    %v42 = vld [vmem:[#allocation2 + $0x10] sm:$0xff]
    %v43 = vld [vmem:[#allocation2 + $0x18] sm:$0xff]
    %v44 = vld [vmem:[#allocation5] sm:$0xff]
    %v45 = vld [vmem:[#allocation5 + $0x8] sm:$0xff]
    %v48 = vcombine.high %v44, %v44
    %v50 = vunpack.c.l.s4 1966171168
    %v51 = vunpack.c.0.s8 %v50
    %v52 = vlaneseq
    %v53 = vshrl.u32 %v52, 7
    %v54 = vsub.s32 %v51, %v53
    %v55 = vrot.slane %v44, %v54
    %v57 = vunpack.c.l.s4 1966171168
    %v58 = vunpack.c.0.s8 %v57
    %v59 = vlaneseq
    %v60 = vshrl.u32 %v59, 7
    %v61 = vsub.s32 %v58, %v60
    %v62 = vrot.slane %v48, %v61
    %v63 = vcombine.high %v55, %v55
    %v64 = vcombine.high %v62, %v62
    %v66 = vunpack.c.l.s4 1966171168
    %v67 = vunpack.c.0.s8 %v66
    %v68 = vlaneseq
    %v69 = vshrl.u32 %v68, 7
    %v70 = vsub.s32 %v67, %v69
    %v71 = vrot.slane %v55, %v70
    %v73 = vunpack.c.l.s4 1966171168
    %v74 = vunpack.c.0.s8 %v73
    %v75 = vlaneseq
    %v76 = vshrl.u32 %v75, 7
    %v77 = vsub.s32 %v74, %v76
    %v78 = vrot.slane %v62, %v77
    %v80 = vunpack.c.l.s4 1966171168
    %v81 = vunpack.c.0.s8 %v80
    %v82 = vlaneseq
    %v83 = vshrl.u32 %v82, 7
    %v84 = vsub.s32 %v81, %v83
    %v85 = vrot.slane %v63, %v84
    %v87 = vunpack.c.l.s4 1966171168
    %v88 = vunpack.c.0.s8 %v87
    %v89 = vlaneseq
    %v90 = vshrl.u32 %v89, 7
    %v91 = vsub.s32 %v88, %v90
    %v92 = vrot.slane %v64, %v91
    %v93 = vcombine.high %v71, %v71
    %v94 = vcombine.high %v78, %v78
    %v95 = vcombine.high %v85, %v85
    %v96 = vcombine.high %v92, %v92
    %v97 = vcombine.high %v45, %v45
    %v99 = vunpack.c.l.s4 1966171168
    %v100 = vunpack.c.0.s8 %v99
    %v101 = vlaneseq
    %v102 = vshrl.u32 %v101, 7
    %v103 = vsub.s32 %v100, %v102
    %v104 = vrot.slane %v45, %v103
    %v106 = vunpack.c.l.s4 1966171168
    %v107 = vunpack.c.0.s8 %v106
    %v108 = vlaneseq
    %v109 = vshrl.u32 %v108, 7
    %v110 = vsub.s32 %v107, %v109
    %v111 = vrot.slane %v97, %v110
    %v112 = vcombine.high %v104, %v104
    %v113 = vcombine.high %v111, %v111
    %v115 = vunpack.c.l.s4 1966171168
    %v116 = vunpack.c.0.s8 %v115
    %v117 = vlaneseq
    %v118 = vshrl.u32 %v117, 7
    %v119 = vsub.s32 %v116, %v118
    %v120 = vrot.slane %v104, %v119
    %v122 = vunpack.c.l.s4 1966171168
    %v123 = vunpack.c.0.s8 %v122
    %v124 = vlaneseq
    %v125 = vshrl.u32 %v124, 7
    %v126 = vsub.s32 %v123, %v125
    %v127 = vrot.slane %v111, %v126
    %v129 = vunpack.c.l.s4 1966171168
    %v130 = vunpack.c.0.s8 %v129
    %v131 = vlaneseq
    %v132 = vshrl.u32 %v131, 7
    %v133 = vsub.s32 %v130, %v132
    %v134 = vrot.slane %v112, %v133
    %v136 = vunpack.c.l.s4 1966171168
    %v137 = vunpack.c.0.s8 %v136
    %v138 = vlaneseq
    %v139 = vshrl.u32 %v138, 7
    %v140 = vsub.s32 %v137, %v139
    %v141 = vrot.slane %v113, %v140
    %v142 = vcombine.high %v120, %v120
    %v143 = vcombine.high %v127, %v127
    %v144 = vcombine.high %v134, %v134
    %v145 = vcombine.high %v141, %v141
    %v146 = vlaneseq
    %v147 = vshrl.u32 %v146, 7
    %v148 = vsub.s32 0, %v147
    %v149 = vrot.slane %v71, %v148
    %v150 = vlaneseq
    %v151 = vshrl.u32 %v150, 7
    %v152 = vsub.s32 0, %v151
    %v153 = vrot.slane %v85, %v152
    %v154 = vlaneseq
    %v155 = vshrl.u32 %v154, 7
    %v156 = vsub.s32 0, %v155
    %v157 = vrot.slane %v93, %v156
    %v158 = vlaneseq
    %v159 = vshrl.u32 %v158, 7
    %v160 = vsub.s32 0, %v159
    %v161 = vrot.slane %v95, %v160
    %v162 = vlaneseq
    %v163 = vshrl.u32 %v162, 7
    %v164 = vsub.s32 0, %v163
    %v165 = vrot.slane %v78, %v164
    %v166 = vlaneseq
    %v167 = vshrl.u32 %v166, 7
    %v168 = vsub.s32 0, %v167
    %v169 = vrot.slane %v92, %v168
    %v170 = vlaneseq
    %v171 = vshrl.u32 %v170, 7
    %v172 = vsub.s32 0, %v171
    %v173 = vrot.slane %v94, %v172
    %v174 = vlaneseq
    %v175 = vshrl.u32 %v174, 7
    %v176 = vsub.s32 0, %v175
    %v177 = vrot.slane %v96, %v176
    %v178 = vlaneseq
    %v179 = vshrl.u32 %v178, 7
    %v180 = vsub.s32 0, %v179
    %v181 = vrot.slane %v120, %v180
    %v182 = vlaneseq
    %v183 = vshrl.u32 %v182, 7
    %v184 = vsub.s32 0, %v183
    %v185 = vrot.slane %v134, %v184
    %v186 = vlaneseq
    %v187 = vshrl.u32 %v186, 7
    %v188 = vsub.s32 0, %v187
    %v189 = vrot.slane %v142, %v188
    %v190 = vlaneseq
    %v191 = vshrl.u32 %v190, 7
    %v192 = vsub.s32 0, %v191
    %v193 = vrot.slane %v144, %v192
    %v194 = vlaneseq
    %v195 = vshrl.u32 %v194, 7
    %v196 = vsub.s32 0, %v195
    %v197 = vrot.slane %v127, %v196
    %v198 = vlaneseq
    %v199 = vshrl.u32 %v198, 7
    %v200 = vsub.s32 0, %v199
    %v201 = vrot.slane %v141, %v200
    %v202 = vlaneseq
    %v203 = vshrl.u32 %v202, 7
    %v204 = vsub.s32 0, %v203
    %v205 = vrot.slane %v143, %v204
    %v206 = vlaneseq
    %v207 = vshrl.u32 %v206, 7
    %v208 = vsub.s32 0, %v207
    %v209 = vrot.slane %v145, %v208
    %v210 = vcombine.low %v149, %v153
    %v211 = vcombine.low %v157, %v161
    %v213 = vunpack.c.l.s4 1983009808
    %v214 = vunpack.c.0.s8 %v213
    %v215 = vlaneseq
    %v216 = vshrl.u32 %v215, 7
    %v217 = vsub.s32 %v214, %v216
    %v218 = vrot.slane %v210, %v217
    %v220 = vunpack.c.l.s4 1983009808
    %v221 = vunpack.c.0.s8 %v220
    %v222 = vlaneseq
    %v223 = vshrl.u32 %v222, 7
    %v224 = vsub.s32 %v221, %v223
    %v225 = vrot.slane %v211, %v224
    %v226 = vcombine.low %v218, %v225
    %v227 = vcombine.low %v165, %v169
    %v228 = vcombine.low %v173, %v177
    %v230 = vunpack.c.l.s4 1983009808
    %v231 = vunpack.c.0.s8 %v230
    %v232 = vlaneseq
    %v233 = vshrl.u32 %v232, 7
    %v234 = vsub.s32 %v231, %v233
    %v235 = vrot.slane %v227, %v234
    %v237 = vunpack.c.l.s4 1983009808
    %v238 = vunpack.c.0.s8 %v237
    %v239 = vlaneseq
    %v240 = vshrl.u32 %v239, 7
    %v241 = vsub.s32 %v238, %v240
    %v242 = vrot.slane %v228, %v241
    %v243 = vcombine.low %v235, %v242
    %v244 = vcombine.low %v181, %v185
    %v245 = vcombine.low %v189, %v193
    %v247 = vunpack.c.l.s4 1983009808
    %v248 = vunpack.c.0.s8 %v247
    %v249 = vlaneseq
    %v250 = vshrl.u32 %v249, 7
    %v251 = vsub.s32 %v248, %v250
    %v252 = vrot.slane %v244, %v251
    %v254 = vunpack.c.l.s4 1983009808
    %v255 = vunpack.c.0.s8 %v254
    %v256 = vlaneseq
    %v257 = vshrl.u32 %v256, 7
    %v258 = vsub.s32 %v255, %v257
    %v259 = vrot.slane %v245, %v258
    %v260 = vcombine.low %v252, %v259
    %v261 = vcombine.low %v197, %v201
    %v262 = vcombine.low %v205, %v209
    %v264 = vunpack.c.l.s4 1983009808
    %v265 = vunpack.c.0.s8 %v264
    %v266 = vlaneseq
    %v267 = vshrl.u32 %v266, 7
    %v268 = vsub.s32 %v265, %v267
    %v269 = vrot.slane %v261, %v268
    %v271 = vunpack.c.l.s4 1983009808
    %v272 = vunpack.c.0.s8 %v271
    %v273 = vlaneseq
    %v274 = vshrl.u32 %v273, 7
    %v275 = vsub.s32 %v272, %v274
    %v276 = vrot.slane %v262, %v275
    %v277 = vcombine.low %v269, %v276
    %v282 = vadd.f32 %v40, %v226
    %v283 = vadd.f32 %v41, %v243
    %v284 = vadd.f32 %v42, %v260
    %v285 = vadd.f32 %v43, %v277
    %vm286 = vcmask 261120
    %287 = vst.msk [vmem:[#allocation7] sm:$0xff] %vm286, %v282
    %288 = vst.msk [vmem:[#allocation7 + $0x8] sm:$0xff] %vm286, %v283
    %289 = vst.msk [vmem:[#allocation7 + $0x10] sm:$0xff] %vm286, %v284
    %290 = vst.msk [vmem:[#allocation7 + $0x18] sm:$0xff] %vm286, %v285
    // Predicated region
    $region18: #{tpu_custom_call.1} parent=1 // pred_check
      _
    $region19: #{tpu_custom_call.1} parent=1 // pred_check_branch
      %292 = sbr.rel (0) target = $region21
    $region20: #{tpu_custom_call.1} parent=1 // pred_region
      %s294 = ssub.s32 512, 512
      %295 = vsyncadd [#allocation4], %s294
      %s296 = sshll.u32 [#allocation7], 4
      %s297 = int_to_ptr.vmem [resolvable:$true] %s296
      %302 = dma.vmem_to_hbm [thread:$0]  %s297, 512, %s2, [#allocation4], 128, 128, 8
    $region21: #{tpu_custom_call.1} parent=1 // pred_fallthru
      _
    // Predicated region
    $region22: #{tpu_custom_call.1} parent=1 // pred_check
      _
    $region23: #{tpu_custom_call.1} parent=1 // pred_check_branch
      %304 = sbr.rel (0) target = $region25
    $region24: #{tpu_custom_call.1} parent=1 // pred_region
      %305 = dma.done [#allocation4], 512
    $region25: #{tpu_custom_call.1} parent=1 // pred_fallthru
      _
    %306 = vsyncpa [#allocation3], 1
    %307 = vsyncpa [#allocation6], 1
    %308 = vsyncpa [#allocation4], 1

</llo_original>
